<compile_context>
chip_gen: v7x
topology: tpu7x:2x2x1
jax: 0.10.0
libtpu: 0.0.40
codegen_flags: <defaults>
</compile_context>

<pallas_src>
import jax
import jax.numpy as jnp
from jax.experimental import pallas as pl
from jax.experimental.pallas import tpu as pltpu


def _outconv_kernel(x_ref, w_ref, b_ref, o_ref):
    # x_ref: (bn, C_in, hw_tile)   w_ref: (C_out, C_in)   b_ref: (C_out, 1)
    # o_ref: (bn, C_out, hw_tile)
    w = w_ref[...]
    b = b_ref[...].astype(jnp.float32)          # (C_out, 1) broadcasts over lanes
    for i in range(x_ref.shape[0]):             # bn is small & static -> unrolled
        acc = jnp.dot(w, x_ref[i], preferred_element_type=jnp.float32) + b
        o_ref[i] = acc.astype(o_ref.dtype)


def _round_up(x, m):
    return ((x + m - 1) // m) * m


def _tile_plan(n, cin, cout, hw, itemsize):
    """Pick (bn, hw_tile, vmem_limit) from shapes and the chip's VMEM size."""
    try:
        vmem_bytes = int(pltpu.get_tpu_info().vmem_capacity_bytes)
    except Exception:  # be conservative (assume v7x-sized VMEM) if unavailable
        vmem_bytes = 64 * 1024 * 1024

    if vmem_bytes >= 100 * 1024 * 1024:          # v5e / v6e (128 MiB physical)
        target_step_bytes = 6 * 1024 * 1024
        buffer_budget = 48 * 1024 * 1024
    else:                                        # v7x (64 MiB physical)
        target_step_bytes = 10 * 1024 * 1024
        buffer_budget = 24 * 1024 * 1024

    per_lane_bytes = (cin + cout) * itemsize     # bytes per lane per batch elem
    hw_pad = _round_up(hw, 128)

    # Lane tile: hit the per-step byte target if possible, never exceed the
    # spatial extent, and keep double-buffered in+out tiles within budget.
    budget_lanes = max(128, (buffer_budget // (2 * per_lane_bytes)) // 128 * 128)
    want_lanes = _round_up(max(target_step_bytes // per_lane_bytes, 128), 128)
    hw_tile = max(128, min(hw_pad, want_lanes, budget_lanes))

    # Batch blocking only helps once a single image fits in one lane tile.
    bn = 1
    if hw_tile >= hw_pad and n > 1:
        step_bytes = per_lane_bytes * hw_tile
        want_bn = max(1, target_step_bytes // step_bytes)
        budget_bn = max(1, buffer_budget // (2 * step_bytes))
        bn = int(min(n, want_bn, budget_bn))

    # v7x megacore: keep >= 2 grid steps when possible so both TCs get work.
    if pl.cdiv(n, bn) * pl.cdiv(hw_pad, hw_tile) == 1:
        if hw_tile > 128:
            hw_tile = _round_up(hw_tile // 2, 128)
        elif bn > 1:
            bn = (bn + 1) // 2

    # VMEM limit derived from the actual buffer sizes (+ headroom), clamped
    # well under the per-generation physical / scoped limits.
    tile_bytes = bn * (cin + cout) * hw_tile * itemsize
    param_bytes = (cout * cin + cout) * itemsize
    vmem_limit = int(min(max(2 * (2 * tile_bytes + 2 * param_bytes),
                             8 * 1024 * 1024),
                         buffer_budget + 8 * 1024 * 1024))
    return bn, hw_tile, vmem_limit


@jax.jit
def outconv_forward(x_nchw, weight, bias):
    """1x1 conv: y[n,co,h,w] = sum_ci x[n,ci,h,w] * W[co,ci,0,0] + b[co].

    x_nchw: (N, C_in, H, W)   weight: (C_out, C_in, 1, 1)   bias: (C_out,)
    returns (N, C_out, H, W)
    """
    n, cin, h, w = x_nchw.shape
    cout = weight.shape[0]
    hw = h * w

    itemsize = jnp.dtype(x_nchw.dtype).itemsize
    bn, hw_tile, vmem_limit = _tile_plan(n, cin, cout, hw, itemsize)

    x = x_nchw.reshape(n, cin, hw)      # contiguous -> free reshape
    w_mat = weight.reshape(cout, cin)   # (C_out, C_in)
    b_mat = bias.reshape(cout, 1)       # (C_out, 1)

    grid = (pl.cdiv(n, bn), pl.cdiv(hw, hw_tile))

    out = pl.pallas_call(
        _outconv_kernel,
        out_shape=jax.ShapeDtypeStruct((n, cout, hw), x_nchw.dtype),
        grid_spec=pltpu.PrefetchScalarGridSpec(
            num_scalar_prefetch=0,
            grid=grid,
            in_specs=[
                pl.BlockSpec((bn, cin, hw_tile), lambda i, j: (i, 0, j)),
                pl.BlockSpec((cout, cin), lambda i, j: (0, 0)),
                pl.BlockSpec((cout, 1), lambda i, j: (0, 0)),
            ],
            out_specs=pl.BlockSpec((bn, cout, hw_tile), lambda i, j: (i, 0, j)),
        ),
        compiler_params=pltpu.CompilerParams(
            dimension_semantics=("parallel", "parallel"),
            vmem_limit_bytes=vmem_limit,
        ),
    )(x, w_mat, b_mat)

    return out.reshape(n, cout, h, w)


if __name__ == "__main__":
    key = jax.random.PRNGKey(0)
    k_x, k_w, k_b = jax.random.split(key, 3)

    N, C_IN, C_OUT, H, W = 2, 4, 3, 16, 16

    x = jax.random.normal(k_x, (N, C_IN, H, W), dtype=jnp.float32)
    # Deterministic "Conv2d(in, out, kernel_size=1)" parameters.
    weight = jax.random.normal(k_w, (C_OUT, C_IN, 1, 1), dtype=jnp.float32) * 0.1
    bias = jax.random.normal(k_b, (C_OUT,), dtype=jnp.float32) * 0.1

    y = outconv_forward(x, weight, bias)
    jax.block_until_ready(y)

    # Cross-check against a plain-JAX reference of the same 1x1 conv.
    ref = (
        jnp.einsum("nchw,oc->nohw", x, weight.reshape(C_OUT, C_IN))
        + bias[None, :, None, None]
    )
    assert y.shape == (N, C_OUT, H, W)
    assert jnp.allclose(y, ref, atol=1e-5, rtol=1e-5)

    print("KERNEL_OK")
</pallas_src>

<mosaic_0001>
module attributes {stable_mosaic.version = 11 : i64} {
  func.func @_outconv_kernel(%arg0: i32, %arg1: i32, %arg2: memref<2x4x128xf32, #tpu.memory_space<vmem>>, %arg3: memref<3x4xf32, #tpu.memory_space<vmem>>, %arg4: memref<3x1xf32, #tpu.memory_space<vmem>>, %arg5: memref<2x3x128xf32, #tpu.memory_space<vmem>>) attributes {dimension_semantics = [#tpu.dimension_semantics<parallel>, #tpu.dimension_semantics<parallel>], iteration_bounds = array<i64: 1, 2>, scalar_prefetch = 0 : i64, scratch_operands = 0 : i64, tpu.core_type = #tpu.core_type<tc>, window_params = [{transform_indices = @transform_0, window_bounds = array<i64: 2, 4, 128>}, {pipeline_mode = #tpu.pipeline_mode<synchronous>, transform_indices = @transform_1, window_bounds = array<i64: 3, 4>}, {pipeline_mode = #tpu.pipeline_mode<synchronous>, transform_indices = @transform_2, window_bounds = array<i64: 3, 1>}, {transform_indices = @transform_3, window_bounds = array<i64: 2, 3, 128>}]} {
    %c0 = arith.constant 0 : index
    %c0_0 = arith.constant 0 : index
    %0 = vector.load %arg3[%c0, %c0_0] : memref<3x4xf32, #tpu.memory_space<vmem>>, vector<3x4xf32>
    %c0_1 = arith.constant 0 : index
    %c0_2 = arith.constant 0 : index
    %1 = vector.load %arg4[%c0_1, %c0_2] : memref<3x1xf32, #tpu.memory_space<vmem>>, vector<3x1xf32>
    %c0_3 = arith.constant 0 : index
    %c0_4 = arith.constant 0 : index
    %c0_5 = arith.constant 0 : index
    %2 = vector.load %arg2[%c0_3, %c0_4, %c0_5] : memref<2x4x128xf32, #tpu.memory_space<vmem>>, vector<1x4x128xf32>
    %3 = vector.shape_cast %2 : vector<1x4x128xf32> to vector<4x128xf32>
    %cst = arith.constant dense<0.000000e+00> : vector<3x128xf32>
    %4 = tpu.matmul %0, %3, %cst {dimension_numbers = #tpu.dot_dimension_numbers<[1], [0], [0], [1], [0, 0, 1, 1], [], []>} : vector<3x4xf32>, vector<4x128xf32>, vector<3x128xf32> -> vector<3x128xf32>
    %5 = vector.broadcast %1 : vector<3x1xf32> to vector<3x128xf32>
    %6 = arith.addf %4, %5 : vector<3x128xf32>
    %c0_6 = arith.constant 0 : index
    %c0_7 = arith.constant 0 : index
    %c0_8 = arith.constant 0 : index
    %7 = vector.load %arg5[%c0_6, %c0_7, %c0_8] : memref<2x3x128xf32, #tpu.memory_space<vmem>>, vector<1x3x128xf32>
    %8 = vector.shape_cast %7 : vector<1x3x128xf32> to vector<3x128xf32>
    %9 = vector.shape_cast %6 : vector<3x128xf32> to vector<1x3x128xf32>
    tpu.vector_store %arg5[%c0_6, %c0_7, %c0_8], %9 {strides = array<i32>} : memref<2x3x128xf32, #tpu.memory_space<vmem>>, vector<1x3x128xf32>,
    %c1 = arith.constant 1 : index
    %c0_9 = arith.constant 0 : index
    %c0_10 = arith.constant 0 : index
    %10 = vector.load %arg2[%c1, %c0_9, %c0_10] : memref<2x4x128xf32, #tpu.memory_space<vmem>>, vector<1x4x128xf32>
    %11 = vector.shape_cast %10 : vector<1x4x128xf32> to vector<4x128xf32>
    %cst_11 = arith.constant dense<0.000000e+00> : vector<3x128xf32>
    %12 = tpu.matmul %0, %11, %cst_11 {dimension_numbers = #tpu.dot_dimension_numbers<[1], [0], [0], [1], [0, 0, 1, 1], [], []>} : vector<3x4xf32>, vector<4x128xf32>, vector<3x128xf32> -> vector<3x128xf32>
    %13 = vector.broadcast %1 : vector<3x1xf32> to vector<3x128xf32>
    %14 = arith.addf %12, %13 : vector<3x128xf32>
    %c1_12 = arith.constant 1 : index
    %c0_13 = arith.constant 0 : index
    %c0_14 = arith.constant 0 : index
    %15 = vector.load %arg5[%c1_12, %c0_13, %c0_14] : memref<2x3x128xf32, #tpu.memory_space<vmem>>, vector<1x3x128xf32>
    %16 = vector.shape_cast %15 : vector<1x3x128xf32> to vector<3x128xf32>
    %17 = vector.shape_cast %14 : vector<3x128xf32> to vector<1x3x128xf32>
    tpu.vector_store %arg5[%c1_12, %c0_13, %c0_14], %17 {strides = array<i32>} : memref<2x3x128xf32, #tpu.memory_space<vmem>>, vector<1x3x128xf32>,
    return
  }
  func.func @transform_0(%arg0: i32, %arg1: i32) -> (i32, i32, i32) {
    %c0_i32 = arith.constant 0 : i32
    %c0_i32_0 = arith.constant 0 : i32
    return %arg0, %c0_i32, %arg1 : i32, i32, i32
  }
  func.func @transform_1(%arg0: i32, %arg1: i32) -> (i32, i32) {
    %c0_i32 = arith.constant 0 : i32
    %c0_i32_0 = arith.constant 0 : i32
    %c0_i32_1 = arith.constant 0 : i32
    return %c0_i32, %c0_i32_0 : i32, i32
  }
  func.func @transform_2(%arg0: i32, %arg1: i32) -> (i32, i32) {
    %c0_i32 = arith.constant 0 : i32
    %c0_i32_0 = arith.constant 0 : i32
    %c0_i32_1 = arith.constant 0 : i32
    return %c0_i32, %c0_i32_0 : i32, i32
  }
  func.func @transform_3(%arg0: i32, %arg1: i32) -> (i32, i32, i32) {
    %c0_i32 = arith.constant 0 : i32
    %c0_i32_0 = arith.constant 0 : i32
    return %arg0, %c0_i32, %arg1 : i32, i32, i32
  }
}

</mosaic_0001>

<llo_original>
// kernel: outconv_forward.1
$region0: #{outconv_forward.1}
  #allocation0 [shape = 'u32[]', space=smem, size = 0x4, offset = 0x4, fixed_abs, tag = 'smem constant byte address 0x4 - core index']
  #allocation1 [shape = 'u32[144,128]{1,0:T(1,128)}', space=vmem, size = 0x12000, scoped, tag = 'internal scratch']
  %s0 = inlined_call_operand.vmem [shape: f32[2,4,256], index: 0, kind: input, shape index: {}]
  %s1 = inlined_call_operand.vmem [shape: f32[3,4], index: 1, kind: input, shape index: {}]
  %s2 = inlined_call_operand.vmem [shape: f32[3,1], index: 2, kind: input, shape index: {}]
  %s3 = inlined_call_operand.vmem [shape: f32[2,3,256], index: 3, kind: output, shape index: {}]
  %s4 = sld [smem:[#allocation0]]
  $region123: #{outconv_forward.1} parent=0
    _
  %s6 = ssub.s32 1, %s4
  %s7 = scalar_select 0, %s6, %s4
  $region1: #{outconv_forward.1} parent=0
    #allocation2 [shape = 'u8[8192]{0}', space=vmem, size = 0x2000, scoped, tag = 'input window, operand 0']
    #allocation3 [shape = 'u8[8192]{0}', space=vmem, size = 0x2000, scoped, tag = 'output window, operand 0']
    loop: start=0, step=1, limit=4
    $region2: #{outconv_forward.1} parent=1 // loop_pre_header
      _
    $region3: #{outconv_forward.1} parent=1 // loop_header
      %s9 = sphi 0, %s13
      %p10 = scmp.ge.s32.totalorder %s9, 4
      %s16 = sphi 0, %s28
      %s17 = sphi 0, %s24
      %s18 = sphi 0, %s16
      %s19 = sphi 0, %s17
      %s20 = sphi 0, %s18
      %s21 = sphi 0, %s19
      %s33 = sphi 0, %s35
      %s36 = sphi 0, %s33
      %s37 = sphi 0, %s36
      %s53 = sphi 0, %s37
      %s57 = sphi 0, %s57
      %s59 = sphi 0, %s57
      %s60 = sphi 0, %s59
      %s74 = sphi 0, %s60
      %s78 = sphi 0, %s78
      %s80 = sphi 0, %s78
      %s81 = sphi 0, %s80
      %s95 = sphi 0, %s81
      %s103 = sphi 0, %s105
      %s106 = sphi 0, %s103
      %s107 = sphi 0, %s106
      %s123 = sphi 0, %s107
    $region4: #{outconv_forward.1} parent=1 // loop_header_branch
      %12 = sbr.rel (%p10) target = $region8
    $region5: #{outconv_forward.1} parent=1 // loop_body
      %s14 = ssub.s32 %s9, 1
      %s15 = ssub.s32 %s9, 2
      %s22 = sadd.s32 1, %s17
      %p23 = scmp.ge.s32.totalorder %s22, 2
      %s24 = scalar_select %p23, 0, %s22
      %s25 = sadd.s32 1, %s16
      %s26 = scalar_select %p23, %s25, %s16
      %p27 = scmp.ge.s32.totalorder %s26, 1
      %s28 = scalar_select %p27, 0, %s26
      %s29 = ssub.s32 %s16, %s28
      %s30 = ssub.s32 %s17, %s24
      %s31 = sor.u32 %s29, %s30
      %p32 = scmp.eq.s32.totalorder %s31, 0
      %s34 = sadd.s32 %s33, 1
      %s35 = scalar_select %p32, %s33, %s34
      %p38 = pneg %p32
      %p39 = scmp.eq.s32.totalorder %s9, 1
      %p40 = por %p38, %p39
      %p41 = scmp.ne.s32.totalorder %s33, %s36
      %p42 = scmp.eq.s32.totalorder %s9, 0
      %p43 = por %p41, %p42
      %p44 = scmp.ne.s32.totalorder %s33, %s36
      %p45 = scmp.eq.s32.totalorder %s14, 1
      %p46 = por %p44, %p45
      %p47 = scmp.ne.s32.totalorder %s36, %s37
      %p48 = scmp.eq.s32.totalorder %s14, 0
      %p49 = por %p47, %p48
      %p50 = scmp.ne.s32.totalorder %s36, %s37
      %p51 = scmp.eq.s32.totalorder %s15, 1
      %p52 = por %p50, %p51
      %p54 = scmp.ne.s32.totalorder %s37, %s53
      %p55 = scmp.eq.s32.totalorder %s15, 0
      %p56 = por %p54, %p55
      %s58 = sadd.s32 %s57, 1
      %p61 = scmp.eq.s32.totalorder %s9, 1
      %p62 = scmp.ne.s32.totalorder %s57, %s59
      %p63 = scmp.eq.s32.totalorder %s9, 0
      %p64 = por %p62, %p63
      %p65 = scmp.ne.s32.totalorder %s57, %s59
      %p66 = scmp.eq.s32.totalorder %s14, 1
      %p67 = por %p65, %p66
      %p68 = scmp.ne.s32.totalorder %s59, %s60
      %p69 = scmp.eq.s32.totalorder %s14, 0
      %p70 = por %p68, %p69
      %p71 = scmp.ne.s32.totalorder %s59, %s60
      %p72 = scmp.eq.s32.totalorder %s15, 1
      %p73 = por %p71, %p72
      %p75 = scmp.ne.s32.totalorder %s60, %s74
      %p76 = scmp.eq.s32.totalorder %s15, 0
      %p77 = por %p75, %p76
      %s79 = sadd.s32 %s78, 1
      %p82 = scmp.eq.s32.totalorder %s9, 1
      %p83 = scmp.ne.s32.totalorder %s78, %s80
      %p84 = scmp.eq.s32.totalorder %s9, 0
      %p85 = por %p83, %p84
      %p86 = scmp.ne.s32.totalorder %s78, %s80
      %p87 = scmp.eq.s32.totalorder %s14, 1
      %p88 = por %p86, %p87
      %p89 = scmp.ne.s32.totalorder %s80, %s81
      %p90 = scmp.eq.s32.totalorder %s14, 0
      %p91 = por %p89, %p90
      %p92 = scmp.ne.s32.totalorder %s80, %s81
      %p93 = scmp.eq.s32.totalorder %s15, 1
      %p94 = por %p92, %p93
      %p96 = scmp.ne.s32.totalorder %s81, %s95
      %p97 = scmp.eq.s32.totalorder %s15, 0
      %p98 = por %p96, %p97
      %s99 = ssub.s32 %s16, %s28
      %s100 = ssub.s32 %s17, %s24
      %s101 = sor.u32 %s99, %s100
      %p102 = scmp.eq.s32.totalorder %s101, 0
      %s104 = sadd.s32 %s103, 1
      %s105 = scalar_select %p102, %s103, %s104
      %p108 = pneg %p102
      %p109 = scmp.eq.s32.totalorder %s9, 1
      %p110 = por %p108, %p109
      %p111 = scmp.ne.s32.totalorder %s103, %s106
      %p112 = scmp.eq.s32.totalorder %s9, 0
      %p113 = por %p111, %p112
      %p114 = scmp.ne.s32.totalorder %s103, %s106
      %p115 = scmp.eq.s32.totalorder %s14, 1
      %p116 = por %p114, %p115
      %p117 = scmp.ne.s32.totalorder %s106, %s107
      %p118 = scmp.eq.s32.totalorder %s14, 0
      %p119 = por %p117, %p118
      %p120 = scmp.ne.s32.totalorder %s106, %s107
      %p121 = scmp.eq.s32.totalorder %s15, 1
      %p122 = por %p120, %p121
      %p124 = scmp.ne.s32.totalorder %s107, %s123
      %p125 = scmp.eq.s32.totalorder %s15, 0
      %p126 = por %p124, %p125
      %p127 = scmp.le.s32.totalorder 1, %s9
      %p128 = scmp.lt.s32.totalorder %s9, 3
      %p129 = pnand %p127, %p128
      %p130 = pneg %p129
      // Predicated region
      $region9: #{outconv_forward.1} parent=5 // pred_check
        _
      $region10: #{outconv_forward.1} parent=5 // pred_check_branch
        %132 = sbr.rel (%p129) target = $region12
      $region11: #{outconv_forward.1} parent=5 // pred_region
        %s133 = ssub.s32 %s9, 1
        // Predicated region
        $region13: #{outconv_forward.1} parent=11 // pred_check
          %p134 = pneg %p70
        $region14: #{outconv_forward.1} parent=11 // pred_check_branch
          %136 = sbr.rel (%p134) target = $region16
        $region15: #{outconv_forward.1} parent=11 // pred_region
          _
        $region16: #{outconv_forward.1} parent=11 // pred_fallthru
          _
        // Predicated region
        $region17: #{outconv_forward.1} parent=11 // pred_check
          %p137 = pneg %p91
        $region18: #{outconv_forward.1} parent=11 // pred_check_branch
          %139 = sbr.rel (%p137) target = $region20
        $region19: #{outconv_forward.1} parent=11 // pred_region
          _
        $region20: #{outconv_forward.1} parent=11 // pred_fallthru
          _
      $region12: #{outconv_forward.1} parent=5 // pred_fallthru
        _
      %p140 = scmp.lt.s32.totalorder %s9, 2
      // Predicated region
      $region21: #{outconv_forward.1} parent=5 // pred_check
        %p141 = pneg %p140
      $region22: #{outconv_forward.1} parent=5 // pred_check_branch
        %143 = sbr.rel (%p141) target = $region24
      $region23: #{outconv_forward.1} parent=5 // pred_region
        // Predicated region
        $region25: #{outconv_forward.1} parent=23 // pred_check
          %p144 = pneg %p43
        $region26: #{outconv_forward.1} parent=23 // pred_check_branch
          %146 = sbr.rel (%p144) target = $region28
        $region27: #{outconv_forward.1} parent=23 // pred_region
          %s147 = sand.u32 %s33, 1
          %s148 = sand.u32 %s33, 1
          %s149 = smul.addr %s148, 8
          %s150 = scalar_lea.vmem [#allocation2], %s149
          %s151 = smul.u32 2, %s16
          %s152 = smul.addr %s151, 2
          %s153 = sadd.s32 %s17, %s152
          %s154 = smul.addr %s153, 4
          %s155 = scalar_lea.vmem %s0, %s154
          // Predicated region
          $region29: #{outconv_forward.1} parent=27 // pred_check
            _
          $region30: #{outconv_forward.1} parent=27 // pred_check_branch
            %157 = sbr.rel (0) target = $region32
          $region31: #{outconv_forward.1} parent=27 // pred_region
            // Predicated region
            $region33: #{outconv_forward.1} parent=31 // pred_check
              _
            $region34: #{outconv_forward.1} parent=31 // pred_check_branch
              %159 = sbr.rel target = $region36
            $region35: #{outconv_forward.1} parent=31 // pred_region
              // Predicated region
              $region48: #{outconv_forward.1} parent=35 // pred_check
                _
              $region49: #{outconv_forward.1} parent=35 // pred_check_branch
                %176 = sbr.rel (0) target = $region51
              $region50: #{outconv_forward.1} parent=35 // pred_region
                loop: start=0, step=1, limit=1
                $region52: #{outconv_forward.1} parent=50 // loop_pre_header
                  _
                $region53: #{outconv_forward.1} parent=50 // loop_header
                  %s178 = sphi 0, %s182
                  %p179 = scmp.ge.s32.totalorder %s178, 1
                  %s183 = sphi %s155, %s155
                  %s184 = sphi %s150, %s150
                $region54: #{outconv_forward.1} parent=50 // loop_header_branch
                  %181 = sbr.rel (%p179) target = $region58
                $region55: #{outconv_forward.1} parent=50 // loop_body
                  _
                $region56: #{outconv_forward.1} parent=50 // loop_footer
                  %s182 = sadd.s32 1, %s178
                $region57: #{outconv_forward.1} parent=50 // loop_footer_branch
                  %177 = sbr.rel target = $region53
                $region58: #{outconv_forward.1} parent=50 // loop_exit
                  _
                loop: start=0, step=1, limit=1
                $region59: #{outconv_forward.1} parent=50 // loop_pre_header
                  _
                $region60: #{outconv_forward.1} parent=50 // loop_header
                  %s187 = sphi 0, %s191
                  %p188 = scmp.ge.s32.totalorder %s187, 1
                  %s192 = sphi %s155, %s155
                  %s193 = sphi %s150, %s150
                $region61: #{outconv_forward.1} parent=50 // loop_header_branch
                  %190 = sbr.rel (%p188) target = $region65
                $region62: #{outconv_forward.1} parent=50 // loop_body
                  %v194 = vld [vmem:[%s192] sm:$0xf]
                  %195 = vst [vmem:[%s193] sm:$0xf] %v194
                  %v196 = vld [vmem:[%s192 + $0x8] sm:$0xf]
                  %197 = vst [vmem:[%s193 + $0x4] sm:$0xf] %v196
                $region63: #{outconv_forward.1} parent=50 // loop_footer
                  %s191 = sadd.s32 1, %s187
                $region64: #{outconv_forward.1} parent=50 // loop_footer_branch
                  %186 = sbr.rel target = $region60
                $region65: #{outconv_forward.1} parent=50 // loop_exit
                  _
              $region51: #{outconv_forward.1} parent=35 // pred_fallthru
                _
            $region36: #{outconv_forward.1} parent=31 // pred_fallthru
              _
            // Predicated region
            $region37: #{outconv_forward.1} parent=31 // pred_check
              _
            $region38: #{outconv_forward.1} parent=31 // pred_check_branch
              %161 = sbr.rel (0) target = $region40
            $region39: #{outconv_forward.1} parent=31 // pred_region
              loop: start=0, step=1, limit=1
              $region41: #{outconv_forward.1} parent=39 // loop_pre_header
                _
              $region42: #{outconv_forward.1} parent=39 // loop_header
                %s164 = sphi 0, %s168
                %p165 = scmp.ge.s32.totalorder %s164, 1
                %s169 = sphi %s155, %s155
                %s170 = sphi %s150, %s150
              $region43: #{outconv_forward.1} parent=39 // loop_header_branch
                %167 = sbr.rel (%p165) target = $region47
              $region44: #{outconv_forward.1} parent=39 // loop_body
                %v171 = vld [vmem:[%s169] sm:$0xf]
                %172 = vst [vmem:[%s170] sm:$0xf] %v171
                %v173 = vld [vmem:[%s169 + $0x8] sm:$0xf]
                %174 = vst [vmem:[%s170 + $0x4] sm:$0xf] %v173
              $region45: #{outconv_forward.1} parent=39 // loop_footer
                %s168 = sadd.s32 1, %s164
              $region46: #{outconv_forward.1} parent=39 // loop_footer_branch
                %163 = sbr.rel target = $region42
              $region47: #{outconv_forward.1} parent=39 // loop_exit
                _
            $region40: #{outconv_forward.1} parent=31 // pred_fallthru
              _
          $region32: #{outconv_forward.1} parent=27 // pred_fallthru
            _
          %198 = vnop
        $region28: #{outconv_forward.1} parent=23 // pred_fallthru
          _
      $region24: #{outconv_forward.1} parent=5 // pred_fallthru
        _
      %p199 = scmp.le.s32.totalorder 1, %s9
      %p200 = scmp.lt.s32.totalorder %s9, 3
      %p201 = pnand %p199, %p200
      %p202 = pneg %p201
      // Predicated region
      $region66: #{outconv_forward.1} parent=5 // pred_check
        _
      $region67: #{outconv_forward.1} parent=5 // pred_check_branch
        %204 = sbr.rel (%p201) target = $region69
      $region68: #{outconv_forward.1} parent=5 // pred_region
        %s205 = ssub.s32 %s9, 1
        %s206 = sand.u32 %s36, 1
        %s207 = sand.u32 %s36, 1
        %s208 = smul.addr %s207, 8
        %s209 = scalar_lea.vmem [#allocation2], %s208
        // Predicated region
        $region70: #{outconv_forward.1} parent=68 // pred_check
          %p210 = pneg %p49
        $region71: #{outconv_forward.1} parent=68 // pred_check_branch
          %212 = sbr.rel (%p210) target = $region73
        $region72: #{outconv_forward.1} parent=68 // pred_region
          _
        $region73: #{outconv_forward.1} parent=68 // pred_fallthru
          _
        %s213 = sand.u32 %s36, 1
        %s214 = sand.u32 %s36, 1
        %s215 = smul.addr %s214, 8
        %s216 = scalar_lea.vmem [#allocation2], %s215
        %p217 = pneg %p49
        %p218 = pneg %p46
        %p219 = pneg %p70
        %p220 = pneg %p67
        %p221 = pneg %p91
        %p222 = pneg %p88
        %p223 = pneg %p119
        %p224 = pneg %p116
        %s225 = sand.u32 %s106, 1
        %s226 = sand.u32 %s106, 1
        %s227 = smul.addr %s226, 8
        %s228 = scalar_lea.vmem [#allocation3], %s227
        %s229 = smul.u32 2, %s18
        %s230 = smul.u32 2, %s18
        %v231 = vld [vmem:[%s1] sm:$0x7]
        %v232 = vld [vmem:[%s2] sm:$0x7]
        %v233 = vld [vmem:[%s209] sm:$0xf]
        %235 = vset.pattern.permute.xlu0 0
        %236 = vperm.xlu0 %235, %v232
        %v237 = vpop.permute.xlu0 %236
        %vm239 = vcmask 31744
        %v241 = vsel %vm239, %v231, 0
        %vm243 = vcmask 1043456
        %v245 = vsel %vm243, %v233, 0
        %247 = vmatprep.subr.mxu0 0.0
        %248 = vmatpush1.msra.mxu0 %v245
        %249 = vmatprep.subr.mxu0 0.0
        %250 = vmatpush1.msra.mxu0 0.0
        %251 = vmatprep.subr.mxu0 0.0
        %252 = vmatpush1.msra.mxu0 0.0
        %253 = vmatprep.subr.mxu0 0.0
        %254 = vmatpush1.msra.mxu0 0.0
        %255 = vmatprep.subr.mxu0 0.0
        %256 = vmatpush1.msra.mxu0 0.0
        %257 = vmatprep.subr.mxu0 0.0
        %258 = vmatpush1.msra.mxu0 0.0
        %259 = vmatprep.subr.mxu0 0.0
        %260 = vmatpush1.msra.mxu0 0.0
        %261 = vmatprep.subr.mxu0 0.0
        %262 = vmatpush1.msra.mxu0 0.0
        %263 = vmatprep.subr.mxu0 0.0
        %264 = vmatpush1.msra.mxu0 0.0
        %265 = vmatprep.subr.mxu0 0.0
        %266 = vmatpush1.msra.mxu0 0.0
        %267 = vmatprep.subr.mxu0 0.0
        %268 = vmatpush1.msra.mxu0 0.0
        %269 = vmatprep.subr.mxu0 0.0
        %270 = vmatpush1.msra.mxu0 0.0
        %271 = vmatprep.subr.mxu0 0.0
        %272 = vmatpush1.msra.mxu0 0.0
        %273 = vmatprep.subr.mxu0 0.0
        %274 = vmatpush1.msra.mxu0 0.0
        %275 = vmatprep.subr.mxu0 0.0
        %276 = vmatpush1.msra.mxu0 0.0
        %277 = vmatprep.subr.mxu0 0.0
        %278 = vmatpush1.msra.mxu0 0.0
        %279 = vmatprep.subr.mxu0 0.0
        %280 = vmatpush1.msra.mxu0 0.0
        %281 = vmatprep.subr.mxu0 0.0
        %282 = vmatpush1.msra.mxu0 0.0
        %283 = vmatprep.subr.mxu0 0.0
        %284 = vmatpush1.msra.mxu0 0.0
        %285 = vmatprep.subr.mxu0 0.0
        %286 = vmatpush1.msra.mxu0 0.0
        %287 = vmatprep.subr.mxu0 0.0
        %288 = vmatpush1.msra.mxu0 0.0
        %289 = vmatprep.subr.mxu0 0.0
        %290 = vmatpush1.msra.mxu0 0.0
        %291 = vmatprep.subr.mxu0 0.0
        %292 = vmatpush1.msra.mxu0 0.0
        %293 = vmatprep.subr.mxu0 0.0
        %294 = vmatpush1.msra.mxu0 0.0
        %295 = vmatprep.subr.mxu0 0.0
        %296 = vmatpush1.msra.mxu0 0.0
        %297 = vmatprep.subr.mxu0 0.0
        %298 = vmatpush1.msra.mxu0 0.0
        %299 = vmatprep.subr.mxu0 0.0
        %300 = vmatpush1.msra.mxu0 0.0
        %301 = vmatprep.subr.mxu0 0.0
        %302 = vmatpush1.msra.mxu0 0.0
        %303 = vmatprep.subr.mxu0 0.0
        %304 = vmatpush1.msra.mxu0 0.0
        %305 = vmatprep.subr.mxu0 0.0
        %306 = vmatpush1.msra.mxu0 0.0
        %307 = vmatprep.subr.mxu0 0.0
        %308 = vmatpush1.msra.mxu0 0.0
        %309 = vmatprep.subr.mxu0 0.0
        %310 = vmatpush1.msra.mxu0 0.0
        %311 = vmatprep.mubr.f32.mxu0 0.0
        %312 = vmatmul.mubr.f32.gmra.mrb[0].mxu0 %v241
        %v313 = vpop.f32.mrb[0].mxu0
        %v314 = vadd.f32 %v237, %v313
        %v315 = vpop.f32.mrb[0].mxu0
        %316 = vdwg.mxu0
        %317 = vst [vmem:[%s228] sm:$0x7] %v314
        %s318 = scalar_lea.vmem %s209, 4 [#allocation2]
        %v319 = vld [vmem:[%s318] sm:$0xf]
        %v321 = vsel %vm243, %v319, 0
        %323 = vmatprep.subr.mxu0 0.0
        %324 = vmatpush1.msra.mxu0 %v321
        %325 = vmatprep.subr.mxu0 0.0
        %326 = vmatpush1.msra.mxu0 0.0
        %327 = vmatprep.subr.mxu0 0.0
        %328 = vmatpush1.msra.mxu0 0.0
        %329 = vmatprep.subr.mxu0 0.0
        %330 = vmatpush1.msra.mxu0 0.0
        %331 = vmatprep.subr.mxu0 0.0
        %332 = vmatpush1.msra.mxu0 0.0
        %333 = vmatprep.subr.mxu0 0.0
        %334 = vmatpush1.msra.mxu0 0.0
        %335 = vmatprep.subr.mxu0 0.0
        %336 = vmatpush1.msra.mxu0 0.0
        %337 = vmatprep.subr.mxu0 0.0
        %338 = vmatpush1.msra.mxu0 0.0
        %339 = vmatprep.subr.mxu0 0.0
        %340 = vmatpush1.msra.mxu0 0.0
        %341 = vmatprep.subr.mxu0 0.0
        %342 = vmatpush1.msra.mxu0 0.0
        %343 = vmatprep.subr.mxu0 0.0
        %344 = vmatpush1.msra.mxu0 0.0
        %345 = vmatprep.subr.mxu0 0.0
        %346 = vmatpush1.msra.mxu0 0.0
        %347 = vmatprep.subr.mxu0 0.0
        %348 = vmatpush1.msra.mxu0 0.0
        %349 = vmatprep.subr.mxu0 0.0
        %350 = vmatpush1.msra.mxu0 0.0
        %351 = vmatprep.subr.mxu0 0.0
        %352 = vmatpush1.msra.mxu0 0.0
        %353 = vmatprep.subr.mxu0 0.0
        %354 = vmatpush1.msra.mxu0 0.0
        %355 = vmatprep.subr.mxu0 0.0
        %356 = vmatpush1.msra.mxu0 0.0
        %357 = vmatprep.subr.mxu0 0.0
        %358 = vmatpush1.msra.mxu0 0.0
        %359 = vmatprep.subr.mxu0 0.0
        %360 = vmatpush1.msra.mxu0 0.0
        %361 = vmatprep.subr.mxu0 0.0
        %362 = vmatpush1.msra.mxu0 0.0
        %363 = vmatprep.subr.mxu0 0.0
        %364 = vmatpush1.msra.mxu0 0.0
        %365 = vmatprep.subr.mxu0 0.0
        %366 = vmatpush1.msra.mxu0 0.0
        %367 = vmatprep.subr.mxu0 0.0
        %368 = vmatpush1.msra.mxu0 0.0
        %369 = vmatprep.subr.mxu0 0.0
        %370 = vmatpush1.msra.mxu0 0.0
        %371 = vmatprep.subr.mxu0 0.0
        %372 = vmatpush1.msra.mxu0 0.0
        %373 = vmatprep.subr.mxu0 0.0
        %374 = vmatpush1.msra.mxu0 0.0
        %375 = vmatprep.subr.mxu0 0.0
        %376 = vmatpush1.msra.mxu0 0.0
        %377 = vmatprep.subr.mxu0 0.0
        %378 = vmatpush1.msra.mxu0 0.0
        %379 = vmatprep.subr.mxu0 0.0
        %380 = vmatpush1.msra.mxu0 0.0
        %381 = vmatprep.subr.mxu0 0.0
        %382 = vmatpush1.msra.mxu0 0.0
        %383 = vmatprep.subr.mxu0 0.0
        %384 = vmatpush1.msra.mxu0 0.0
        %385 = vmatprep.subr.mxu0 0.0
        %386 = vmatpush1.msra.mxu0 0.0
        %387 = vmatprep.mubr.f32.mxu0 0.0
        %388 = vmatmul.mubr.f32.gmra.mrb[0].mxu0 %v241
        %v389 = vpop.f32.mrb[0].mxu0
        %v390 = vadd.f32 %v237, %v389
        %v391 = vpop.f32.mrb[0].mxu0
        %392 = vdwg.mxu0
        %s393 = scalar_lea.vmem %s228, 4 [#allocation3]
        %394 = vst [vmem:[%s393] sm:$0x7] %v390
        %s395 = sand.u32 %s106, 1
        %s396 = sand.u32 %s106, 1
        %s397 = smul.addr %s396, 8
        %s398 = scalar_lea.vmem [#allocation3], %s397
        // Predicated region
        $region74: #{outconv_forward.1} parent=68 // pred_check
          %p399 = pneg %p116
        $region75: #{outconv_forward.1} parent=68 // pred_check_branch
          %401 = sbr.rel (%p399) target = $region77
        $region76: #{outconv_forward.1} parent=68 // pred_region
          %s402 = smul.u32 2, %s18
          %s403 = smul.addr %s402, 2
          %s404 = sadd.s32 %s19, %s403
          %s405 = smul.addr %s404, 4
          %s406 = scalar_lea.vmem %s3, %s405
          // Predicated region
          $region78: #{outconv_forward.1} parent=76 // pred_check
            _
          $region79: #{outconv_forward.1} parent=76 // pred_check_branch
            %408 = sbr.rel (0) target = $region81
          $region80: #{outconv_forward.1} parent=76 // pred_region
            // Predicated region
            $region82: #{outconv_forward.1} parent=80 // pred_check
              _
            $region83: #{outconv_forward.1} parent=80 // pred_check_branch
              %410 = sbr.rel target = $region85
            $region84: #{outconv_forward.1} parent=80 // pred_region
              // Predicated region
              $region97: #{outconv_forward.1} parent=84 // pred_check
                _
              $region98: #{outconv_forward.1} parent=84 // pred_check_branch
                %427 = sbr.rel (0) target = $region100
              $region99: #{outconv_forward.1} parent=84 // pred_region
                loop: start=0, step=1, limit=1
                $region101: #{outconv_forward.1} parent=99 // loop_pre_header
                  _
                $region102: #{outconv_forward.1} parent=99 // loop_header
                  %s429 = sphi 0, %s433
                  %p430 = scmp.ge.s32.totalorder %s429, 1
                  %s434 = sphi %s398, %s398
                  %s435 = sphi %s406, %s406
                $region103: #{outconv_forward.1} parent=99 // loop_header_branch
                  %432 = sbr.rel (%p430) target = $region107
                $region104: #{outconv_forward.1} parent=99 // loop_body
                  _
                $region105: #{outconv_forward.1} parent=99 // loop_footer
                  %s433 = sadd.s32 1, %s429
                $region106: #{outconv_forward.1} parent=99 // loop_footer_branch
                  %428 = sbr.rel target = $region102
                $region107: #{outconv_forward.1} parent=99 // loop_exit
                  _
                loop: start=0, step=1, limit=1
                $region108: #{outconv_forward.1} parent=99 // loop_pre_header
                  _
                $region109: #{outconv_forward.1} parent=99 // loop_header
                  %s438 = sphi 0, %s442
                  %p439 = scmp.ge.s32.totalorder %s438, 1
                  %s443 = sphi %s398, %s398
                  %s444 = sphi %s406, %s406
                $region110: #{outconv_forward.1} parent=99 // loop_header_branch
                  %441 = sbr.rel (%p439) target = $region114
                $region111: #{outconv_forward.1} parent=99 // loop_body
                  %v445 = vld [vmem:[%s443] sm:$0xf]
                  %446 = vst [vmem:[%s444] sm:$0xf] %v445
                  %v447 = vld [vmem:[%s443 + $0x4] sm:$0xf]
                  %448 = vst [vmem:[%s444 + $0x8] sm:$0xf] %v447
                $region112: #{outconv_forward.1} parent=99 // loop_footer
                  %s442 = sadd.s32 1, %s438
                $region113: #{outconv_forward.1} parent=99 // loop_footer_branch
                  %437 = sbr.rel target = $region109
                $region114: #{outconv_forward.1} parent=99 // loop_exit
                  _
              $region100: #{outconv_forward.1} parent=84 // pred_fallthru
                _
            $region85: #{outconv_forward.1} parent=80 // pred_fallthru
              _
            // Predicated region
            $region86: #{outconv_forward.1} parent=80 // pred_check
              _
            $region87: #{outconv_forward.1} parent=80 // pred_check_branch
              %412 = sbr.rel (0) target = $region89
            $region88: #{outconv_forward.1} parent=80 // pred_region
              loop: start=0, step=1, limit=1
              $region90: #{outconv_forward.1} parent=88 // loop_pre_header
                _
              $region91: #{outconv_forward.1} parent=88 // loop_header
                %s415 = sphi 0, %s419
                %p416 = scmp.ge.s32.totalorder %s415, 1
                %s420 = sphi %s398, %s398
                %s421 = sphi %s406, %s406
              $region92: #{outconv_forward.1} parent=88 // loop_header_branch
                %418 = sbr.rel (%p416) target = $region96
              $region93: #{outconv_forward.1} parent=88 // loop_body
                %v422 = vld [vmem:[%s420] sm:$0xf]
                %423 = vst [vmem:[%s421] sm:$0xf] %v422
                %v424 = vld [vmem:[%s420 + $0x4] sm:$0xf]
                %425 = vst [vmem:[%s421 + $0x8] sm:$0xf] %v424
              $region94: #{outconv_forward.1} parent=88 // loop_footer
                %s419 = sadd.s32 1, %s415
              $region95: #{outconv_forward.1} parent=88 // loop_footer_branch
                %414 = sbr.rel target = $region91
              $region96: #{outconv_forward.1} parent=88 // loop_exit
                _
            $region89: #{outconv_forward.1} parent=80 // pred_fallthru
              _
          $region81: #{outconv_forward.1} parent=76 // pred_fallthru
            _
          %449 = vnop
        $region77: #{outconv_forward.1} parent=68 // pred_fallthru
          _
      $region69: #{outconv_forward.1} parent=5 // pred_fallthru
        _
      %p450 = scmp.le.s32.totalorder 2, %s9
      // Predicated region
      $region115: #{outconv_forward.1} parent=5 // pred_check
        %p451 = pneg %p450
      $region116: #{outconv_forward.1} parent=5 // pred_check_branch
        %453 = sbr.rel (%p451) target = $region118
      $region117: #{outconv_forward.1} parent=5 // pred_region
        %s454 = ssub.s32 %s9, 2
        // Predicated region
        $region119: #{outconv_forward.1} parent=117 // pred_check
          %p455 = pneg %p122
        $region120: #{outconv_forward.1} parent=117 // pred_check_branch
          %457 = sbr.rel (%p455) target = $region122
        $region121: #{outconv_forward.1} parent=117 // pred_region
          %s458 = sand.u32 %s107, 1
          %s459 = sand.u32 %s107, 1
          %s460 = smul.addr %s459, 8
          %s461 = scalar_lea.vmem [#allocation3], %s460
        $region122: #{outconv_forward.1} parent=117 // pred_fallthru
          _
      $region118: #{outconv_forward.1} parent=5 // pred_fallthru
        _
    $region6: #{outconv_forward.1} parent=1 // loop_footer
      %s13 = sadd.s32 1, %s9
    $region7: #{outconv_forward.1} parent=1 // loop_footer_branch
      %8 = sbr.rel target = $region3
    $region8: #{outconv_forward.1} parent=1 // loop_exit
      _

</llo_original>
